<compile_context>
chip_gen: v6e
topology: v6e:2x2x1
jax: 0.10.0
libtpu: 0.0.40
codegen_flags: <defaults>
</compile_context>

<pallas_src>
import math

import jax
import jax.numpy as jnp
from jax.experimental import pallas as pl
from jax.experimental.pallas import tpu as pltpu

_MIB = 1024 * 1024
_LANES = 128
_SUBLANES = 8


def _all_gather_kernel(x_ref, o_ref):
    # Pure fan-out copy: store the source row-tile into every destination
    # replica slot of this output block. AllGather has no arithmetic.
    for d in range(o_ref.shape[0]):
        o_ref[d, :, :] = x_ref[...]


def _vmem_limit_bytes():
    """Per-generation VMEM limit: physical capacity minus headroom, clamped.
    v7x (64 MiB) -> 48 MiB; v5e/v6e (128 MiB) -> 112 MiB."""
    try:
        cap = int(pltpu.get_tpu_info().vmem_capacity_bytes)
    except Exception:
        cap = 64 * _MIB  # conservative fallback (v7x has the smallest VMEM)
    return max(32 * _MIB, min(cap - 16 * _MIB, 112 * _MIB))


def _dest_group_size(W):
    """Destination replicas per output block: the largest divisor of W that is
    <= W//2, so the dest grid axis has >= 2 entries (keeps both v7x
    TensorCores busy even when there is a single row tile)."""
    if W <= 1:
        return 1
    for d in range(W // 2, 0, -1):
        if W % d == 0:
            return d
    return 1


def all_gather(x):
    """x: [W, *shard]  (x[w] is rank w's shard).
    Returns [W, W, *shard]: out[w] is the gathered tensor_list on rank w."""
    W = x.shape[0]
    shard_shape = x.shape[1:]
    F = int(math.prod(shard_shape)) if shard_shape else 1
    total = W * F
    itemsize = x.dtype.itemsize

    # -------------------------------------------------------------- tiling
    C = _LANES
    dblk = _dest_group_size(W)
    n_dg = W // dblk

    vmem_limit = _vmem_limit_bytes()
    usable = vmem_limit - 4 * _MIB  # headroom for internal scratch / metadata
    # Per grid step the pipeline double-buffers one (tr, C) input block and
    # one (dblk, tr, C) output block -> 2 * (1 + dblk) block-sized buffers.
    block_bytes = usable // (2 * (1 + dblk))
    tr_max = max(_SUBLANES,
                 (block_bytes // (C * itemsize)) // _SUBLANES * _SUBLANES)

    r_needed = -(-total // C)  # ceil-div: rows of 128 lanes needed
    if r_needed <= tr_max:
        tr = r_needed           # single row tile; full-extent block is allowed
        n_rt = 1
    else:
        tr = tr_max             # multiple of 8 -> unmasked sublane tiles
        n_rt = -(-r_needed // tr)
    r_pad = n_rt * tr
    padded_total = r_pad * C

    # Lane-dense slab: flatten all shards row-major, pad to whole row tiles.
    flat = x.reshape(-1)
    if padded_total != total:
        flat = jnp.pad(flat, (0, padded_total - total))
    slab = flat.reshape(r_pad, C)

    out = pl.pallas_call(
        _all_gather_kernel,
        out_shape=jax.ShapeDtypeStruct((W, r_pad, C), x.dtype),
        grid_spec=pltpu.PrefetchScalarGridSpec(
            num_scalar_prefetch=0,
            grid=(n_rt, n_dg),  # (source row tile, destination-replica group)
            in_specs=[
                # Input block index is independent of the dest axis: each
                # source tile is DMA'd from HBM once per core and reused from
                # VMEM for every destination write.
                pl.BlockSpec((tr, C), lambda r, d: (r, 0)),
            ],
            out_specs=pl.BlockSpec((dblk, tr, C), lambda r, d: (d, r, 0)),
        ),
        compiler_params=pltpu.CompilerParams(
            # Every (r, d) step writes a disjoint output tile and carries no
            # state -> both axes parallel (lets v7x's two TCs split the grid).
            dimension_semantics=("parallel", "parallel"),
            vmem_limit_bytes=vmem_limit,
        ),
        # Purely memory-bound: ~1 read of the slab + W replica writes.
        cost_estimate=pl.CostEstimate(
            flops=0,
            transcendentals=0,
            bytes_accessed=(1 + W) * padded_total * itemsize,
        ),
    )(slab)

    out = out.reshape(W, padded_total)
    if padded_total != total:
        out = out[:, :total]
    return out.reshape((W, W) + shard_shape)


if __name__ == "__main__":
    key = jax.random.PRNGKey(0)

    W, M, N = 4, 8, 128  # simulated world size 4, per-rank shard [8, 128]
    x = jax.random.normal(key, (W, M, N), dtype=jnp.float32)

    out = jax.block_until_ready(all_gather(x))

    # Reference: every rank's gathered tensor_list is the stack of all shards.
    ref = jnp.broadcast_to(x[None, ...], (W, W, M, N))

    assert out.shape == (W, W, M, N)
    assert out.dtype == jnp.float32
    assert jnp.array_equal(out, ref)  # pure copy -> exact equality

    print("KERNEL_OK")
</pallas_src>

<mosaic_0001>
module attributes {stable_mosaic.version = 11 : i64} {
  func.func @_all_gather_kernel(%arg0: i32, %arg1: i32, %arg2: memref<32x128xf32, #tpu.memory_space<vmem>>, %arg3: memref<2x32x128xf32, #tpu.memory_space<vmem>>) attributes {dimension_semantics = [#tpu.dimension_semantics<parallel>, #tpu.dimension_semantics<parallel>], iteration_bounds = array<i64: 1, 2>, scalar_prefetch = 0 : i64, scratch_operands = 0 : i64, tpu.core_type = #tpu.core_type<tc>, window_params = [{transform_indices = @transform_0, window_bounds = array<i64: 32, 128>}, {transform_indices = @transform_1, window_bounds = array<i64: 2, 32, 128>}]} {
    %c0 = arith.constant 0 : index
    %c0_0 = arith.constant 0 : index
    %0 = vector.load %arg2[%c0, %c0_0] : memref<32x128xf32, #tpu.memory_space<vmem>>, vector<32x128xf32>
    %c0_1 = arith.constant 0 : index
    %c0_2 = arith.constant 0 : index
    %c0_3 = arith.constant 0 : index
    %1 = vector.load %arg3[%c0_1, %c0_2, %c0_3] : memref<2x32x128xf32, #tpu.memory_space<vmem>>, vector<1x32x128xf32>
    %2 = vector.shape_cast %1 : vector<1x32x128xf32> to vector<32x128xf32>
    %3 = vector.shape_cast %0 : vector<32x128xf32> to vector<1x32x128xf32>
    tpu.vector_store %arg3[%c0_1, %c0_2, %c0_3], %3 {strides = array<i32>} : memref<2x32x128xf32, #tpu.memory_space<vmem>>, vector<1x32x128xf32>,
    %c0_4 = arith.constant 0 : index
    %c0_5 = arith.constant 0 : index
    %4 = vector.load %arg2[%c0_4, %c0_5] : memref<32x128xf32, #tpu.memory_space<vmem>>, vector<32x128xf32>
    %c1 = arith.constant 1 : index
    %c0_6 = arith.constant 0 : index
    %c0_7 = arith.constant 0 : index
    %5 = vector.load %arg3[%c1, %c0_6, %c0_7] : memref<2x32x128xf32, #tpu.memory_space<vmem>>, vector<1x32x128xf32>
    %6 = vector.shape_cast %5 : vector<1x32x128xf32> to vector<32x128xf32>
    %7 = vector.shape_cast %4 : vector<32x128xf32> to vector<1x32x128xf32>
    tpu.vector_store %arg3[%c1, %c0_6, %c0_7], %7 {strides = array<i32>} : memref<2x32x128xf32, #tpu.memory_space<vmem>>, vector<1x32x128xf32>,
    return
  }
  func.func @transform_0(%arg0: i32, %arg1: i32) -> (i32, i32) {
    %c0_i32 = arith.constant 0 : i32
    %c0_i32_0 = arith.constant 0 : i32
    return %arg0, %c0_i32 : i32, i32
  }
  func.func @transform_1(%arg0: i32, %arg1: i32) -> (i32, i32, i32) {
    %c0_i32 = arith.constant 0 : i32
    %c0_i32_0 = arith.constant 0 : i32
    return %arg1, %arg0, %c0_i32 : i32, i32, i32
  }
}

</mosaic_0001>

<llo_original>
// kernel: tpu_custom_call.1
$region0: #{tpu_custom_call.1}
  #allocation0 [shape = 'u32[]', space=smem, size = 0x4, offset = 0x4, fixed_abs, tag = 'smem constant byte address 0x4 - core index']
  #allocation1 [shape = 'u32[144,128]{1,0:T(1,128)}', space=vmem, size = 0x12000, scoped, tag = 'internal scratch']
  %s0 = inlined_call_operand.hbm [shape: f32[32,128], index: 0, kind: input, shape index: {}]
  %s1 = inlined_call_operand.hbm [shape: f32[4,32,128], index: 1, kind: output, shape index: {}]
  %s2 = sld [smem:[#allocation0]]
  $region41: #{tpu_custom_call.1} parent=0
    _
  %s4 = ssub.s32 1, %s2
  %s5 = scalar_select 0, %s4, %s2
  $region1: #{tpu_custom_call.1} parent=0
    #allocation2 [shape = 'u8[16384]{0}', space=vmem, size = 0x4000, scoped, tag = 'input window, operand 0, single buffered']
    #allocation3 [shape = 's32[2]{0}', space=sflag, size = 0x8, scoped, tag = 'scoped memory for tpu_custom_call.1']
    #allocation4 [shape = 's32[2]{0}', space=sflag, size = 0x8, scoped, tag = 'scoped memory for tpu_custom_call.1']
    #allocation5 [shape = 'u8[65536]{0}', space=vmem, size = 0x10000, scoped, tag = 'output window, operand 0']
    %6 = vsyncpa [#allocation3], 0
    %7 = vsyncpa [#allocation4], 0
    %s8 = scalar_lea.sflag [#allocation4], 1
    %9 = vsyncpa %s8, 0
    loop: start=0, step=1, limit=4
    $region2: #{tpu_custom_call.1} parent=1 // loop_pre_header
      _
    $region3: #{tpu_custom_call.1} parent=1 // loop_header
      %s11 = sphi 0, %s15
      %p12 = scmp.ge.s32.totalorder %s11, 4
      %s18 = sphi 0, %s30
      %s19 = sphi 0, %s26
      %s20 = sphi 0, %s18
      %s21 = sphi 0, %s19
      %s22 = sphi 0, %s20
      %s23 = sphi 0, %s21
      %s33 = sphi 0, %s35
      %s36 = sphi 0, %s33
      %s37 = sphi 0, %s36
      %s53 = sphi 0, %s37
      %s61 = sphi 0, %s63
      %s64 = sphi 0, %s61
      %s65 = sphi 0, %s64
      %s81 = sphi 0, %s65
    $region4: #{tpu_custom_call.1} parent=1 // loop_header_branch
      %14 = sbr.rel (%p12) target = $region8
    $region5: #{tpu_custom_call.1} parent=1 // loop_body
      %s16 = ssub.s32 %s11, 1
      %s17 = ssub.s32 %s11, 2
      %s24 = sadd.s32 1, %s19
      %p25 = scmp.ge.s32.totalorder %s24, 2
      %s26 = scalar_select %p25, 0, %s24
      %s27 = sadd.s32 1, %s18
      %s28 = scalar_select %p25, %s27, %s18
      %p29 = scmp.ge.s32.totalorder %s28, 1
      %s30 = scalar_select %p29, 0, %s28
      %s31 = ssub.s32 %s18, %s30
      %p32 = scmp.eq.s32.totalorder %s31, 0
      %s34 = sadd.s32 %s33, 1
      %s35 = scalar_select %p32, %s33, %s34
      %p38 = pneg %p32
      %p39 = scmp.eq.s32.totalorder %s11, 1
      %p40 = por %p38, %p39
      %p41 = scmp.ne.s32.totalorder %s33, %s36
      %p42 = scmp.eq.s32.totalorder %s11, 0
      %p43 = por %p41, %p42
      %p44 = scmp.ne.s32.totalorder %s33, %s36
      %p45 = scmp.eq.s32.totalorder %s16, 1
      %p46 = por %p44, %p45
      %p47 = scmp.ne.s32.totalorder %s36, %s37
      %p48 = scmp.eq.s32.totalorder %s16, 0
      %p49 = por %p47, %p48
      %p50 = scmp.ne.s32.totalorder %s36, %s37
      %p51 = scmp.eq.s32.totalorder %s17, 1
      %p52 = por %p50, %p51
      %p54 = scmp.ne.s32.totalorder %s37, %s53
      %p55 = scmp.eq.s32.totalorder %s17, 0
      %p56 = por %p54, %p55
      %s57 = ssub.s32 %s19, %s26
      %s58 = ssub.s32 %s18, %s30
      %s59 = sor.u32 %s57, %s58
      %p60 = scmp.eq.s32.totalorder %s59, 0
      %s62 = sadd.s32 %s61, 1
      %s63 = scalar_select %p60, %s61, %s62
      %p66 = pneg %p60
      %p67 = scmp.eq.s32.totalorder %s11, 1
      %p68 = por %p66, %p67
      %p69 = scmp.ne.s32.totalorder %s61, %s64
      %p70 = scmp.eq.s32.totalorder %s11, 0
      %p71 = por %p69, %p70
      %p72 = scmp.ne.s32.totalorder %s61, %s64
      %p73 = scmp.eq.s32.totalorder %s16, 1
      %p74 = por %p72, %p73
      %p75 = scmp.ne.s32.totalorder %s64, %s65
      %p76 = scmp.eq.s32.totalorder %s16, 0
      %p77 = por %p75, %p76
      %p78 = scmp.ne.s32.totalorder %s64, %s65
      %p79 = scmp.eq.s32.totalorder %s17, 1
      %p80 = por %p78, %p79
      %p82 = scmp.ne.s32.totalorder %s65, %s81
      %p83 = scmp.eq.s32.totalorder %s17, 0
      %p84 = por %p82, %p83
      %p85 = scmp.le.s32.totalorder 1, %s11
      %p86 = scmp.lt.s32.totalorder %s11, 3
      %p87 = pnand %p85, %p86
      %p88 = pneg %p87
      // Predicated region
      $region9: #{tpu_custom_call.1} parent=5 // pred_check
        _
      $region10: #{tpu_custom_call.1} parent=5 // pred_check_branch
        %90 = sbr.rel (%p87) target = $region12
      $region11: #{tpu_custom_call.1} parent=5 // pred_region
        %s91 = ssub.s32 %s11, 1
        // Predicated region
        $region13: #{tpu_custom_call.1} parent=11 // pred_check
          %p92 = pneg %p49
        $region14: #{tpu_custom_call.1} parent=11 // pred_check_branch
          %94 = sbr.rel (%p92) target = $region16
        $region15: #{tpu_custom_call.1} parent=11 // pred_region
          %s95 = smul.u32 4, %s20
          %s97 = ssub.s32 512, 512
          %98 = vsyncadd [#allocation3], %s97
          %s99 = smul.addr %s95, 128
          %s100 = scalar_lea.hbm %s0, %s99
          %s101 = sshll.u32 [#allocation2], 4
          %s102 = int_to_ptr.vmem [resolvable:$true] %s101
          %107 = dma.hbm_to_vmem [thread:$0]  %s100, 512, %s102, [#allocation3], 128, 128, 8
        $region16: #{tpu_custom_call.1} parent=11 // pred_fallthru
          _
      $region12: #{tpu_custom_call.1} parent=5 // pred_fallthru
        _
      %p108 = scmp.lt.s32.totalorder %s11, 2
      // Predicated region
      $region17: #{tpu_custom_call.1} parent=5 // pred_check
        %p109 = pneg %p108
      $region18: #{tpu_custom_call.1} parent=5 // pred_check_branch
        %111 = sbr.rel (%p109) target = $region20
      $region19: #{tpu_custom_call.1} parent=5 // pred_region
        _
      $region20: #{tpu_custom_call.1} parent=5 // pred_fallthru
        _
      %p112 = scmp.le.s32.totalorder 1, %s11
      %p113 = scmp.lt.s32.totalorder %s11, 3
      %p114 = pnand %p112, %p113
      %p115 = pneg %p114
      // Predicated region
      $region21: #{tpu_custom_call.1} parent=5 // pred_check
        _
      $region22: #{tpu_custom_call.1} parent=5 // pred_check_branch
        %117 = sbr.rel (%p114) target = $region24
      $region23: #{tpu_custom_call.1} parent=5 // pred_region
        %s118 = ssub.s32 %s11, 1
        // Predicated region
        $region25: #{tpu_custom_call.1} parent=23 // pred_check
          %p119 = pneg %p49
        $region26: #{tpu_custom_call.1} parent=23 // pred_check_branch
          %121 = sbr.rel (%p119) target = $region28
        $region27: #{tpu_custom_call.1} parent=23 // pred_region
          %122 = dma.done [#allocation3], 512
        $region28: #{tpu_custom_call.1} parent=23 // pred_fallthru
          _
        %p123 = pneg %p49
        %p124 = pneg %p46
        %p125 = pneg %p77
        %p126 = pneg %p74
        %s127 = sand.u32 %s64, 1
        %s128 = scalar_lea.sflag [#allocation4], %s127
        %s129 = sand.u32 %s64, 1
        %s130 = smul.addr %s129, 64
        %s131 = scalar_lea.vmem [#allocation5], %s130
        %s132 = smul.u32 4, %s20
        %s133 = smul.u32 2, %s21
        %s134 = smul.u32 4, %s20
        %v135 = vld [vmem:[#allocation2] sm:$0xff]
        %v136 = vld [vmem:[#allocation2 + $0x8] sm:$0xff]
        %v137 = vld [vmem:[#allocation2 + $0x10] sm:$0xff]
        %v138 = vld [vmem:[#allocation2 + $0x18] sm:$0xff]
        %139 = vst [vmem:[%s131] sm:$0xff] %v135
        %140 = vst [vmem:[%s131 + $0x8] sm:$0xff] %v136
        %141 = vst [vmem:[%s131 + $0x10] sm:$0xff] %v137
        %142 = vst [vmem:[%s131 + $0x18] sm:$0xff] %v138
        %v143 = vld [vmem:[#allocation2] sm:$0xff]
        %v144 = vld [vmem:[#allocation2 + $0x8] sm:$0xff]
        %v145 = vld [vmem:[#allocation2 + $0x10] sm:$0xff]
        %v146 = vld [vmem:[#allocation2 + $0x18] sm:$0xff]
        %s147 = scalar_lea.vmem %s131, 32 [#allocation5]
        %148 = vst [vmem:[%s147] sm:$0xff] %v143
        %149 = vst [vmem:[%s147 + $0x8] sm:$0xff] %v144
        %150 = vst [vmem:[%s147 + $0x10] sm:$0xff] %v145
        %151 = vst [vmem:[%s147 + $0x18] sm:$0xff] %v146
        %s152 = sand.u32 %s64, 1
        %s153 = scalar_lea.sflag [#allocation4], %s152
        %s154 = sand.u32 %s64, 1
        %s155 = smul.addr %s154, 64
        %s156 = scalar_lea.vmem [#allocation5], %s155
        // Predicated region
        $region29: #{tpu_custom_call.1} parent=23 // pred_check
          %p157 = pneg %p74
        $region30: #{tpu_custom_call.1} parent=23 // pred_check_branch
          %159 = sbr.rel (%p157) target = $region32
        $region31: #{tpu_custom_call.1} parent=23 // pred_region
          %s160 = smul.u32 2, %s21
          %s161 = smul.u32 4, %s20
          %s163 = ssub.s32 1024, 1024
          %164 = vsyncadd %s153, %s163
          %s165 = smul.addr %s160, 4
          %s166 = sadd.s32 %s161, %s165
          %s167 = smul.addr %s166, 128
          %s168 = scalar_lea.hbm %s1, %s167
          %s169 = sshll.u32 %s156, 4
          %s170 = int_to_ptr.vmem [resolvable:$true] %s169
          %175 = dma.vmem_to_hbm [thread:$0]  %s170, 1024, %s168, %s153, 128, 128, 8
        $region32: #{tpu_custom_call.1} parent=23 // pred_fallthru
          _
      $region24: #{tpu_custom_call.1} parent=5 // pred_fallthru
        _
      %p176 = scmp.le.s32.totalorder 2, %s11
      // Predicated region
      $region33: #{tpu_custom_call.1} parent=5 // pred_check
        %p177 = pneg %p176
      $region34: #{tpu_custom_call.1} parent=5 // pred_check_branch
        %179 = sbr.rel (%p177) target = $region36
      $region35: #{tpu_custom_call.1} parent=5 // pred_region
        %s180 = ssub.s32 %s11, 2
        // Predicated region
        $region37: #{tpu_custom_call.1} parent=35 // pred_check
          %p181 = pneg %p80
        $region38: #{tpu_custom_call.1} parent=35 // pred_check_branch
          %183 = sbr.rel (%p181) target = $region40
        $region39: #{tpu_custom_call.1} parent=35 // pred_region
          %s184 = sand.u32 %s65, 1
          %s185 = scalar_lea.sflag [#allocation4], %s184
          %s186 = sand.u32 %s65, 1
          %s187 = smul.addr %s186, 64
          %s188 = scalar_lea.vmem [#allocation5], %s187
          %189 = dma.done %s185, 1024
        $region40: #{tpu_custom_call.1} parent=35 // pred_fallthru
          _
      $region36: #{tpu_custom_call.1} parent=5 // pred_fallthru
        _
    $region6: #{tpu_custom_call.1} parent=1 // loop_footer
      %s15 = sadd.s32 1, %s11
    $region7: #{tpu_custom_call.1} parent=1 // loop_footer_branch
      %10 = sbr.rel target = $region3
    $region8: #{tpu_custom_call.1} parent=1 // loop_exit
      _
    %190 = vsyncpa [#allocation3], 1
    %s191 = scalar_lea.sflag [#allocation3], 1
    %192 = vsyncpa %s191, 1
    %193 = vsyncpa [#allocation4], 1
    %s194 = scalar_lea.sflag [#allocation4], 1
    %195 = vsyncpa %s194, 1

</llo_original>
